<compile_context>
chip_gen: v7x
topology: tpu7x:2x2x1
jax: 0.10.0
libtpu: 0.0.40
codegen_flags: <defaults>
</compile_context>

<pallas_src>
import functools
import re

import jax
import jax.numpy as jnp
from jax import lax
from jax.experimental import pallas as pl
from jax.experimental.pallas import tpu as pltpu


def _round_up(x, m):
    return (x + m - 1) // m * m


# ---------------- chip generation / dtype plan ----------------
def _tpu_generation():
    try:
        kind = jax.devices()[0].device_kind.lower()
    except Exception:
        return 6
    m = re.search(r"(\d+)", kind)
    return int(m.group(1)) if m else 6


_GEN = _tpu_generation()
_VMEM_LIMIT = (44 if _GEN >= 7 else 64) * 1024 * 1024

_BIN_DTYPES = None  # (binary operand dtype, matmul accumulator dtype)


def _probe_binary_path(cand_dtype, acc_dtype):
    """Compile+run a tiny binarize-store kernel and a tiny matmul kernel in the
    candidate dtype; True only if both run and give the exact expected result."""
    try:
        def store_k(x_ref, o_ref):
            o_ref[...] = jnp.where(x_ref[...] >= 0.0, 1.0, -1.0).astype(o_ref.dtype)

        def mm_k(a_ref, b_ref, o_ref):
            o_ref[...] = lax.dot_general(
                a_ref[...], b_ref[...], (((1,), (0,)), ((), ())),
                preferred_element_type=acc_dtype).astype(jnp.float32)

        x = jnp.ones((32, 128), jnp.float32)
        a = pl.pallas_call(
            store_k, out_shape=jax.ShapeDtypeStruct((32, 128), cand_dtype))(x)
        b = jnp.ones((128, 128), jnp.float32).astype(cand_dtype)
        o = pl.pallas_call(
            mm_k, out_shape=jax.ShapeDtypeStruct((32, 128), jnp.float32))(a, b)
        return bool(jnp.all(jax.block_until_ready(o) == 128.0))
    except Exception:
        return False


def _binary_dtypes():
    """Narrowest exactly-representable dtype for the +/-1 operands that this
    chip's MXU supports (verified by a probe), plus its accumulator dtype."""
    global _BIN_DTYPES
    if _BIN_DTYPES is None:
        fp8 = getattr(jnp, "float8_e4m3fn", None)
        if _GEN >= 7 and fp8 is not None and _probe_binary_path(fp8, jnp.float32):
            _BIN_DTYPES = (fp8, jnp.float32)          # v7x: fp8 MXU, no int path
        elif _GEN <= 6 and _probe_binary_path(jnp.int8, jnp.int32):
            _BIN_DTYPES = (jnp.int8, jnp.int32)       # v5e/v6e: int8 MXU
        else:
            _BIN_DTYPES = (jnp.bfloat16, jnp.float32)  # safe fallback
    return _BIN_DTYPES


# ---------------- per-matmul tile planning ----------------
@functools.lru_cache(maxsize=None)
def _plan(M, K, N, a_bytes, b_bytes):
    """Pick (tm, tk, tn) minimizing a rough cost: HBM traffic (A re-streamed
    Np/tn times, B re-streamed Mp/tm times), MXU passes (RHS consumed in
    256-wide chunks on v6e/v7x, 128 on v5e) and 0.35us per grid step, subject
    to double-buffered tiles fitting VMEM.  On v7x, plans with <2 blocks on the
    parallel axes are penalized so both TensorCores get work."""
    sub_a = {1: 32, 2: 16, 4: 8}[a_bytes]                 # sublane multiple
    bw = {5: 0.8e6, 6: 1.35e6}.get(_GEN, 1.6e6)           # HBM bytes / us
    mxu_n = 128 if _GEN <= 5 else 256
    mac_rate = {5: 1.0e8, 6: 4.5e8}.get(_GEN, 2.5e8)      # bf16 MAC / us
    if a_bytes == 1 and b_bytes == 1:
        mac_rate *= 2.0                                   # int8 / fp8 MXU rate
    budget = _VMEM_LIMIT - (4 << 20)

    tm_cands = sorted({_round_up(min(M, t), sub_a)
                       for t in (M, 128, 256, 384, 512, 768, 1024, 1536, 2048)})
    tk_cands = sorted({_round_up(-(-K // s), 128)
                       for s in (1, 2, 3, 4, 5, 6, 8, 10, 12, 16)})
    tn_cands = {_round_up(min(N, t), 128)
                for t in (N, 128, 256, 384, 512, 768, 1024)}
    if _GEN >= 6:                                         # 256-wide MXU
        n256 = _round_up(N, 256)
        tn_cands |= {_round_up(min(n256, t), 256)
                     for t in (n256, 256, 512, 768, 1024)}
    tn_cands = sorted(tn_cands)

    best = None
    for tm in tm_cands:
        for tk in tk_cands:
            for tn in tn_cands:
                Mp, Kp, Np = _round_up(M, tm), _round_up(K, tk), _round_up(N, tn)
                gm, gk, gn = Mp // tm, Kp // tk, Np // tn
                vmem = 2 * (tm * tk * a_bytes + tk * tn * b_bytes) + 3 * tm * tn * 4
                if vmem > budget:
                    continue
                hbm = Mp * Kp * a_bytes * gn + Kp * Np * b_bytes * gm + Mp * Np * 4
                macs = Mp * Kp * gn * _round_up(tn, mxu_n)
                cost = hbm / bw + macs / mac_rate + 0.35 * gm * gn * gk
                if _GEN >= 7 and gm * gn < 2:
                    cost *= 1.9                            # both TCs need work
                key = (cost, gm * gn * gk, tm, tk, tn)
                if best is None or key < best:
                    best = key
    assert best is not None
    _, _, tm, tk, tn = best
    return tm, tk, tn, _round_up(M, tm), _round_up(K, tk), _round_up(N, tn)


# ---------------- Pallas tiled matmul (binary weights pre-padded) ----------------
def _matmul_kernel_acc(a_ref, b_ref, o_ref, acc_ref, *, acc_dtype):
    @pl.when(pl.program_id(2) == 0)
    def _():
        acc_ref[...] = jnp.zeros_like(acc_ref)

    acc_ref[...] += lax.dot_general(a_ref[...], b_ref[...],
                                    (((1,), (0,)), ((), ())),
                                    preferred_element_type=acc_dtype)

    @pl.when(pl.program_id(2) == pl.num_programs(2) - 1)
    def _():
        o_ref[...] = acc_ref[...].astype(o_ref.dtype)


def _matmul_kernel_single(a_ref, b_ref, o_ref, *, acc_dtype):
    o_ref[...] = lax.dot_general(a_ref[...], b_ref[...],
                                 (((1,), (0,)), ((), ())),
                                 preferred_element_type=acc_dtype).astype(o_ref.dtype)


def matmul_prepared(a, b_pad, K, N):
    """C = A @ B (f32 result).  a: (M, K) unpadded; b_pad: (Kp, Np) pre-binarized,
    pre-padded weights built with the same tile plan in prepare_params."""
    M = a.shape[0]
    assert a.shape[1] == K, (a.shape, K)
    tm, tk, tn, Mp, Kp, Np = _plan(M, K, N, a.dtype.itemsize, b_pad.dtype.itemsize)
    assert b_pad.shape == (Kp, Np), (b_pad.shape, (Kp, Np))
    if (Mp, Kp) != (M, K):
        a = jnp.pad(a, ((0, Mp - M), (0, Kp - K)))
    acc_dtype = jnp.int32 if (a.dtype == jnp.int8 and b_pad.dtype == jnp.int8) \
        else jnp.float32
    gm, gn, gk = Mp // tm, Np // tn, Kp // tk
    if gk == 1:
        kernel = functools.partial(_matmul_kernel_single, acc_dtype=acc_dtype)
        scratch = []
    else:
        kernel = functools.partial(_matmul_kernel_acc, acc_dtype=acc_dtype)
        scratch = [pltpu.VMEM((tm, tn), acc_dtype)]
    out = pl.pallas_call(
        kernel,
        out_shape=jax.ShapeDtypeStruct((Mp, Np), jnp.float32),
        grid_spec=pltpu.PrefetchScalarGridSpec(
            num_scalar_prefetch=0,
            grid=(gm, gn, gk),
            in_specs=[
                pl.BlockSpec((tm, tk), lambda i, j, k: (i, k)),
                pl.BlockSpec((tk, tn), lambda i, j, k: (k, j)),
            ],
            out_specs=pl.BlockSpec((tm, tn), lambda i, j, k: (i, j)),
            scratch_shapes=scratch,
        ),
        compiler_params=pltpu.CompilerParams(
            dimension_semantics=("parallel", "parallel", "arbitrary"),
            vmem_limit_bytes=_VMEM_LIMIT),
    )(a, b_pad)
    return out[:M, :N]


# ---------------- Fused BatchNorm + Hardtanh + BinaryConnect ----------------
def _bn_act_kernel(x_ref, scale_ref, shift_ref, o_ref):
    y = x_ref[...] * scale_ref[...] + shift_ref[...]    # BN (affine folded)
    y = jnp.clip(y, -1.0, 1.0)                           # Hardtanh
    y = jnp.where(y >= 0.0, 1.0, -1.0)                   # BinaryConnect (det.)
    o_ref[...] = y.astype(o_ref.dtype)


def bn_hardtanh_bin(x2d, gamma, beta, out_dtype, eps=1e-5):
    """x2d: (R, C) channels-last f32.  Training-mode BN (two-pass batch stats,
    biased variance) then Hardtanh + deterministic sign, emitted in the narrow
    binary dtype so downstream im2col / matmul A streams are narrow."""
    R, C = x2d.shape
    xf = x2d.astype(jnp.float32)
    mean = jnp.mean(xf, axis=0)
    var = jnp.mean(jnp.square(xf - mean[None, :]), axis=0)
    scale = gamma / jnp.sqrt(var + eps)
    shift = beta - mean * scale
    tr = 512 if R >= 512 else _round_up(R, 32)
    Rp = _round_up(R, tr)
    x_p = jnp.pad(xf, ((0, Rp - R), (0, 0))) if Rp != R else xf
    out = pl.pallas_call(
        _bn_act_kernel,
        out_shape=jax.ShapeDtypeStruct((Rp, C), out_dtype),
        grid_spec=pltpu.PrefetchScalarGridSpec(
            num_scalar_prefetch=0,
            grid=(Rp // tr,),
            in_specs=[
                pl.BlockSpec((tr, C), lambda i: (i, 0)),
                pl.BlockSpec((1, C), lambda i: (0, 0)),
                pl.BlockSpec((1, C), lambda i: (0, 0)),
            ],
            out_specs=pl.BlockSpec((tr, C), lambda i: (i, 0)),
        ),
        compiler_params=pltpu.CompilerParams(
            dimension_semantics=("parallel",),
            vmem_limit_bytes=_VMEM_LIMIT),
    )(x_p, scale[None, :], shift[None, :])
    return out[:R]


def bn2d_htanh_bin_nhwc(x, gamma, beta, out_dtype):
    N, H, W, C = x.shape
    y = bn_hardtanh_bin(x.reshape(N * H * W, C), gamma, beta, out_dtype)
    return y.reshape(N, H, W, C)


# ---------------- MaxPool2d(kernel=3, stride=2), NHWC ----------------
def _maxpool_kernel(ee_ref, eo_ref, oe_ref, oo_ref, o_ref, *, OH, OW):
    refs = (ee_ref, eo_ref, oe_ref, oo_ref)
    m = None
    for dh in range(3):
        for dw in range(3):
            r = refs[(dh % 2) * 2 + (dw % 2)]
            hs, ws = dh // 2, dw // 2
            win = r[0, hs:hs + OH, ws:ws + OW, :]
            m = win if m is None else jnp.maximum(m, win)
    o_ref[0] = m


def maxpool_3x3_s2_nhwc(x):
    """3x3/stride-2 max pool on NHWC via an even/odd (polyphase) H,W split in
    glue; the 9-way max runs in one Pallas kernel (no 9x window stack)."""
    N, H, W, C = x.shape
    OH = (H - 3) // 2 + 1
    OW = (W - 3) // 2 + 1
    pad_h, pad_w = H % 2, W % 2
    if pad_h or pad_w:
        neg = jnp.finfo(x.dtype).min
        xp = jnp.pad(x, ((0, 0), (0, pad_h), (0, pad_w), (0, 0)),
                     constant_values=neg)
    else:
        xp = x
    Hh, Wh = xp.shape[1] // 2, xp.shape[2] // 2
    comps = [xp[:, dh::2, dw::2, :] for dh in range(2) for dw in range(2)]
    out = pl.pallas_call(
        functools.partial(_maxpool_kernel, OH=OH, OW=OW),
        out_shape=jax.ShapeDtypeStruct((N, OH, OW, C), x.dtype),
        grid_spec=pltpu.PrefetchScalarGridSpec(
            num_scalar_prefetch=0,
            grid=(N,),
            in_specs=[pl.BlockSpec((1, Hh, Wh, C), lambda n: (n, 0, 0, 0))] * 4,
            out_specs=pl.BlockSpec((1, OH, OW, C), lambda n: (n, 0, 0, 0)),
        ),
        compiler_params=pltpu.CompilerParams(
            dimension_semantics=("parallel",),
            vmem_limit_bytes=_VMEM_LIMIT),
    )(*comps)
    return out


# ---------------- LogSoftmax (dim=1) ----------------
def _log_softmax_kernel(x_ref, o_ref):
    x = x_ref[...]
    m = jnp.max(x, axis=-1, keepdims=True)
    e = jnp.exp(x - m)
    s = jnp.sum(e, axis=-1, keepdims=True)
    o_ref[...] = x - m - jnp.log(s)


def log_softmax(x):
    N, C = x.shape
    Np, Cp = _round_up(N, 8), _round_up(C, 128)
    x_p = jnp.full((Np, Cp), -1e30, jnp.float32).at[:N, :C].set(x)
    out = pl.pallas_call(
        _log_softmax_kernel,
        out_shape=jax.ShapeDtypeStruct((Np, Cp), jnp.float32),
        grid_spec=pltpu.PrefetchScalarGridSpec(
            num_scalar_prefetch=0,
            grid=(1,),
            in_specs=[pl.BlockSpec((Np, Cp), lambda i: (0, 0))],
            out_specs=pl.BlockSpec((Np, Cp), lambda i: (0, 0)),
        ),
    )(x_p)
    return out[:N, :C]


# ---------------- BinConv2d (NHWC im2col -> Pallas matmul) ----------------
def bin_conv2d_nhwc(x, w_pad, KH, KW, C_in, C_out, stride, padding):
    """x: (N,H,W,C_in) NHWC; w_pad: prepared (Kp, Np) binary weight matrix."""
    N, H, W, C = x.shape
    assert C == C_in
    xp = jnp.pad(x, ((0, 0), (padding, padding), (padding, padding), (0, 0))) \
        if padding else x
    Hp, Wp = H + 2 * padding, W + 2 * padding
    OH = (Hp - KH) // stride + 1
    OW = (Wp - KW) // stride + 1
    cols = []
    for ki in range(KH):
        for kj in range(KW):
            cols.append(xp[:, ki:ki + stride * (OH - 1) + 1:stride,
                              kj:kj + stride * (OW - 1) + 1:stride, :])
    patches = jnp.stack(cols, axis=3)                    # (N, OH, OW, KH*KW, C)
    patches = patches.reshape(N * OH * OW, KH * KW * C)  # K order = (KH, KW, C)
    out = matmul_prepared(patches, w_pad, KH * KW * C, C_out)
    return out.reshape(N, OH, OW, C_out)


# ---------------- Network config / one-time weight preparation ----------------
_CONV_CFG = [
    # (name, C_in, C_out, K, stride, padding)
    ('conv1', 3, 192, 11, 4, 2),
    ('conv2', 192, 576, 5, 1, 2),
    ('conv3', 576, 1152, 3, 1, 1),
    ('conv4', 1152, 768, 3, 1, 1),
    ('conv5', 768, 256, 3, 1, 1),
]
_FC_CFG = [('fc1', 9216, 4096), ('fc2', 4096, 4096), ('fc3', 4096, 10)]
_POOL_AFTER = ('conv1', 'conv2', 'conv5')


def _layer_geometry(batch, hw=224):
    """(M, K, N) of every matmul in the net for a given batch size, so that
    prepare_params pads weights with exactly the tile plan the forward uses."""
    h = w = hw
    geo = {}
    for name, ci, co, k, s, p in _CONV_CFG:
        oh = (h + 2 * p - k) // s + 1
        ow = (w + 2 * p - k) // s + 1
        geo[name] = (batch * oh * ow, k * k * ci, co)
        h, w = oh, ow
        if name in _POOL_AFTER:
            h = (h - 3) // 2 + 1
            w = (w - 3) // 2 + 1
    for name, ci, co in _FC_CFG:
        geo[name] = (batch, ci, co)
    return geo


def prepare_params(p, batch, image_hw=224):
    """One-time prep: binarize weights (w>=0 -> +1 else -1), reorder to the NHWC
    im2col column order (KH,KW,C), pad K/N to the tile plan and cast to the
    narrow binary dtype (+/-1 exact).  conv1's weight stays bf16 because its A
    operand is the (bf16) raw image.  Conv/FC biases followed by training-mode
    BN are exactly absorbed by the batch mean and dropped; fc3's bias is kept."""
    act_dtype, _ = _binary_dtypes()
    act_bytes = jnp.dtype(act_dtype).itemsize
    geo = _layer_geometry(batch, image_hw)
    prep = {}
    for idx, (name, ci, co, k, _s, _p) in enumerate(_CONV_CFG):
        w = p[name + '_w']                                    # (O, C, KH, KW)
        wb = jnp.where(w >= 0.0, 1.0, -1.0)
        wmat = wb.transpose(2, 3, 1, 0).reshape(k * k * ci, co)
        w_dtype = jnp.bfloat16 if idx == 0 else act_dtype
        a_bytes = 2 if idx == 0 else act_bytes
        M, K, N = geo[name]
        _, _, _, _, Kp, Np = _plan(M, K, N, a_bytes, jnp.dtype(w_dtype).itemsize)
        if (Kp, Np) != (K, N):
            wmat = jnp.pad(wmat, ((0, Kp - K), (0, Np - N)))
        prep[name + '_w'] = wmat.astype(w_dtype)
    for name, ci, co in _FC_CFG:
        w = p[name + '_w']                                    # (O, I)
        wmat = jnp.where(w >= 0.0, 1.0, -1.0).T               # (I, O)
        M, K, N = geo[name]
        _, _, _, _, Kp, Np = _plan(M, K, N, act_bytes, act_bytes)
        if (Kp, Np) != (K, N):
            wmat = jnp.pad(wmat, ((0, Kp - K), (0, Np - N)))
        prep[name + '_w'] = wmat.astype(act_dtype)
    prep['fc3_b'] = p['fc3_b']
    for i in range(1, 8):
        prep[f'bn{i}_g'] = p[f'bn{i}_g']
        prep[f'bn{i}_b'] = p[f'bn{i}_b']
    return prep


# ---------------- Full forward ----------------
def alexnet_bin_forward(x_nchw, prep):
    act_dtype, _ = _binary_dtypes()
    # NHWC once; conv1's raw-image operand runs in bf16 (weights are +/-1 exact)
    x = jnp.transpose(x_nchw, (0, 2, 3, 1)).astype(jnp.bfloat16)
    # features: each stage ends with fused BN + Hardtanh + BinaryConnect
    for i, (name, ci, co, k, stride, padding) in enumerate(_CONV_CFG, start=1):
        x = bin_conv2d_nhwc(x, prep[name + '_w'], k, k, ci, co, stride, padding)
        if name in _POOL_AFTER:
            x = maxpool_3x3_s2_nhwc(x)
        x = bn2d_htanh_bin_nhwc(x, prep[f'bn{i}_g'], prep[f'bn{i}_b'], act_dtype)
    # flatten in PyTorch NCHW .view(N, 256*6*6) order -- single tiny transpose
    n = x.shape[0]
    x = jnp.transpose(x, (0, 3, 1, 2)).reshape(n, 256 * 6 * 6)
    # classifier (its leading BinaryConnect is already fused into bn5 above)
    x = matmul_prepared(x, prep['fc1_w'], 256 * 6 * 6, 4096)
    x = bn_hardtanh_bin(x, prep['bn6_g'], prep['bn6_b'], act_dtype)
    x = matmul_prepared(x, prep['fc2_w'], 4096, 4096)
    x = bn_hardtanh_bin(x, prep['bn7_g'], prep['bn7_b'], act_dtype)
    x = matmul_prepared(x, prep['fc3_w'], 4096, 10) + prep['fc3_b'][None, :]
    return log_softmax(x)


# ---------------- Deterministic parameter init ----------------
def init_params(key):
    ks = jax.random.split(key, 16)

    def nrm(k, shape, s=0.05):
        return s * jax.random.normal(k, shape, dtype=jnp.float32)

    params = {}
    conv_cfg = [(192, 3, 11), (576, 192, 5), (1152, 576, 3), (768, 1152, 3),
                (256, 768, 3)]
    i = 0
    for li, (o, c, k) in enumerate(conv_cfg, start=1):
        params[f'conv{li}_w'] = nrm(ks[i], (o, c, k, k)); i += 1
        params[f'conv{li}_b'] = nrm(ks[i], (o,), 0.01); i += 1
        params[f'bn{li}_g'] = jnp.ones((o,), jnp.float32)   # PyTorch BN default
        params[f'bn{li}_b'] = jnp.zeros((o,), jnp.float32)
    fc_cfg = [(4096, 9216), (4096, 4096), (10, 4096)]
    for li, (o, c) in enumerate(fc_cfg, start=1):
        params[f'fc{li}_w'] = nrm(ks[i], (o, c)); i += 1
        params[f'fc{li}_b'] = nrm(ks[i], (o,), 0.01); i += 1
        if li < 3:
            params[f'bn{5 + li}_g'] = jnp.ones((o,), jnp.float32)
            params[f'bn{5 + li}_b'] = jnp.zeros((o,), jnp.float32)
    return params


if __name__ == "__main__":
    key = jax.random.PRNGKey(0)
    pkey, xkey = jax.random.split(key)
    params = init_params(pkey)
    _binary_dtypes()                              # resolve/probe dtype path once
    prep = jax.jit(prepare_params, static_argnums=(1,))(params, 2)
    # AlexNet geometry (hard-coded 256*6*6 flatten) forces 224x224 input; batch=2.
    x = jax.random.normal(xkey, (2, 3, 224, 224), dtype=jnp.float32)
    out = jax.jit(alexnet_bin_forward)(x, prep)
    out = jax.block_until_ready(out)
    assert out.shape == (2, 10), out.shape
    assert bool(jnp.all(jnp.isfinite(out)))
    print("KERNEL_OK")
</pallas_src>

<mosaic_0001>
module attributes {stable_mosaic.version = 11 : i64} {
  func.func @store_k(%arg0: memref<32x128xf32, #tpu.memory_space<vmem>>, %arg1: memref<32x128xi8, #tpu.memory_space<vmem>>) attributes {dimension_semantics = [], scalar_prefetch = 0 : i64, scratch_operands = 0 : i64, tpu.core_type = #tpu.core_type<tc>} {
    %c0 = arith.constant 0 : index
    %c0_0 = arith.constant 0 : index
    %0 = vector.load %arg0[%c0, %c0_0] : memref<32x128xf32, #tpu.memory_space<vmem>>, vector<32x128xf32>
    %cst = arith.constant 0.000000e+00 : f32
    %1 = vector.broadcast %cst : f32 to vector<32x128xf32>
    %2 = arith.cmpf oge, %0, %1 : vector<32x128xf32>
    %cst_1 = arith.constant 1.000000e+00 : f32
    %cst_2 = arith.constant -1.000000e+00 : f32
    %3 = vector.broadcast %cst_1 : f32 to vector<32x128xf32>
    %4 = vector.broadcast %cst_2 : f32 to vector<32x128xf32>
    %5 = arith.select %2, %3, %4 : vector<32x128xi1>, vector<32x128xf32>
    %6 = arith.fptosi %5 : vector<32x128xf32> to vector<32x128xi8>
    %c0_3 = arith.constant 0 : index
    %c0_4 = arith.constant 0 : index
    %7 = vector.load %arg1[%c0_3, %c0_4] : memref<32x128xi8, #tpu.memory_space<vmem>>, vector<32x128xi8>
    tpu.vector_store %arg1[%c0_3, %c0_4], %6 {strides = array<i32>} : memref<32x128xi8, #tpu.memory_space<vmem>>, vector<32x128xi8>,
    return
  }
}

</mosaic_0001>

<llo_original>
// kernel: tpu_custom_call.1
$region0: #{tpu_custom_call.1}
  #allocation0 [shape = 'u32[]', space=smem, size = 0x4, offset = 0x4, fixed_abs, tag = 'smem constant byte address 0x4 - core index']
  #allocation1 [shape = 'u32[144,128]{1,0:T(1,128)}', space=vmem, size = 0x12000, scoped, tag = 'internal scratch']
  %s0 = inlined_call_operand.hbm [shape: f32[32,128], index: 0, kind: input, shape index: {}]
  %s1 = inlined_call_operand.hbm [shape: s8[32,128], index: 1, kind: output, shape index: {}]
  %s2 = sld [smem:[#allocation0]]
  $region18: #{tpu_custom_call.1} parent=0
    _
  %s4 = ssub.s32 1, %s2
  %s5 = scalar_select 0, %s4, %s2
  $region1: #{tpu_custom_call.1} parent=0
    #allocation2 [shape = 'u8[16384]{0}', space=vmem, size = 0x4000, scoped, tag = 'input window, operand 0, single buffered']
    #allocation3 [shape = 's32[1]{0}', space=sflag, size = 0x4, scoped, tag = 'scoped memory for tpu_custom_call.1']
    #allocation4 [shape = 's32[1]{0}', space=sflag, size = 0x4, scoped, tag = 'scoped memory for tpu_custom_call.1']
    #allocation5 [shape = 'u8[4096]{0}', space=vmem, size = 0x1000, scoped, tag = 'output window, operand 0, single buffered']
    %6 = vsyncpa [#allocation3], 0
    %7 = vsyncpa [#allocation4], 0
    // Predicated region
    $region2: #{tpu_custom_call.1} parent=1 // pred_check
      _
    $region3: #{tpu_custom_call.1} parent=1 // pred_check_branch
      %9 = sbr.rel (0) target = $region5
    $region4: #{tpu_custom_call.1} parent=1 // pred_region
      %s11 = ssub.s32 512, 512
      %12 = vsyncadd [#allocation3], %s11
      %s13 = sshll.u32 [#allocation2], 4
      %s14 = int_to_ptr.vmem [resolvable:$true] %s13
      %19 = dma.hbm_to_vmem [thread:$0]  %s0, 512, %s14, [#allocation3], 128, 128, 8
    $region5: #{tpu_custom_call.1} parent=1 // pred_fallthru
      _
    // Predicated region
    $region6: #{tpu_custom_call.1} parent=1 // pred_check
      _
    $region7: #{tpu_custom_call.1} parent=1 // pred_check_branch
      %21 = sbr.rel (0) target = $region9
    $region8: #{tpu_custom_call.1} parent=1 // pred_region
      %22 = dma.done [#allocation3], 512
    $region9: #{tpu_custom_call.1} parent=1 // pred_fallthru
      _
    %v23 = vld [vmem:[#allocation2] sm:$0xff]
    %v24 = vld [vmem:[#allocation2 + $0x8] sm:$0xff]
    %v25 = vld [vmem:[#allocation2 + $0x10] sm:$0xff]
    %v26 = vld [vmem:[#allocation2 + $0x18] sm:$0xff]
    %vm27 = vcmp.ge.f32.partialorder %v23, 0.0
    %vm28 = vcmp.ge.f32.partialorder %v24, 0.0
    %vm29 = vcmp.ge.f32.partialorder %v25, 0.0
    %vm30 = vcmp.ge.f32.partialorder %v26, 0.0
    %v31 = vsel %vm27, 1.0, -1.0
    %v32 = vsel %vm28, 1.0, -1.0
    %v33 = vsel %vm29, 1.0, -1.0
    %v34 = vsel %vm30, 1.0, -1.0
    %v35 = vtrunc.f32 %v31
    %v36 = vtrunc.f32 %v32
    %v37 = vtrunc.f32 %v33
    %v38 = vtrunc.f32 %v34
    %v39 = vpack.c.f32.eXmY %v35, %v36, 312
    %v43 = vpack.c.f32.eXmY %v37, %v38, 312
    %v47 = vpack.c.b8 %v43, %v39
    %49 = vst [vmem:[#allocation5] sm:$0xff] %v47
    // Predicated region
    $region10: #{tpu_custom_call.1} parent=1 // pred_check
      _
    $region11: #{tpu_custom_call.1} parent=1 // pred_check_branch
      %51 = sbr.rel (0) target = $region13
    $region12: #{tpu_custom_call.1} parent=1 // pred_region
      %s53 = ssub.s32 128, 128
      %54 = vsyncadd [#allocation4], %s53
      %s56 = sshll.u32 [#allocation5], 4
      %s57 = int_to_ptr.vmem [resolvable:$true] %s56
      %59 = dma.vmem_to_hbm [thread:$0]  %s57, 128, %s1, [#allocation4]
    $region13: #{tpu_custom_call.1} parent=1 // pred_fallthru
      _
    // Predicated region
    $region14: #{tpu_custom_call.1} parent=1 // pred_check
      _
    $region15: #{tpu_custom_call.1} parent=1 // pred_check_branch
      %61 = sbr.rel (0) target = $region17
    $region16: #{tpu_custom_call.1} parent=1 // pred_region
      %62 = dma.done [#allocation4], 128
    $region17: #{tpu_custom_call.1} parent=1 // pred_fallthru
      _
    %63 = vsyncpa [#allocation3], 1
    %64 = vsyncpa [#allocation4], 1

</llo_original>
